<compile_context>
chip_gen: v7x
topology: tpu7x:2x2x1
jax: 0.10.0
libtpu: 0.0.40
codegen_flags: <defaults>
</compile_context>

<pallas_src>
import jax
import jax.numpy as jnp
from jax.experimental import pallas as pl
from jax.experimental.pallas import tpu as pltpu


def _round_up(x, m):
    return ((x + m - 1) // m) * m


def _cdiv(a, b):
    return (a + b - 1) // b


def _vmem_cap_bytes():
    """Per-core VMEM ceiling with headroom for compiler-internal scratch."""
    cap = 64 << 20  # safe default = v7x per-TC physical VMEM
    try:
        info = pltpu.get_tpu_info()
        cap = int(getattr(info, "vmem_capacity_bytes", cap))
    except Exception:
        pass
    return (cap * 3) // 4  # ~48 MiB on v7x, ~96 MiB on v5e/v6e


def _choose_tiles(B, dim_input, dim_out, out_itemsize, vmem_cap):
    # ---- N tile: prefer the full (unpadded) dim_out so output stores are one
    # lane-dense block and no wrapper pad/slice is needed; fall back to a
    # 128-multiple tile if the double-buffered W_eff tile would exceed ~1/3 of
    # the VMEM budget (v7x case for large dim_input*dim_head).
    if 2 * dim_input * dim_out * 4 <= vmem_cap // 3:
        tn = dim_out
    else:
        tn = 4096
        while tn > 128 and 2 * dim_input * tn * 4 > vmem_cap // 3:
            tn //= 2

    # ---- Batch tile: target a ~4 MiB output tile per grid step so the DMA
    # dwarfs the ~0.35 us/step pipeline overhead; keep >=2 batch steps for
    # megacore sharding when the batch allows; never exceed the rounded batch.
    sub = 16 if out_itemsize < 4 else 8  # bf16 packs 2 rows/sublane
    tb = max(sub, min((4 << 20) // max(1, tn * out_itemsize), 8192))
    if B > 2 * sub:
        tb = min(tb, _round_up(_cdiv(B, 2), sub))
    tb = min(_round_up(tb, sub), _round_up(B, sub))
    return tb, tn


def _fused_kernel(x_ref, w_ref, b_ref, o_ref):
    # Single MXU pass per (batch, dout) tile, f32 accumulation.
    # NOTE: K = dim_input is tiny -> MXU has slack; do NOT pad K (roofline is
    # the HBM output stream, not the MXU).
    z = jnp.dot(x_ref[...], w_ref[...], preferred_element_type=jnp.float32)
    z = z + b_ref[...]
    # Sigmoid via EUP-only ops: exp + approximate reciprocal (frees VALU slots).
    o_ref[...] = pl.reciprocal(1.0 + jnp.exp(-z), approx=True).astype(o_ref.dtype)


def fold_params(params):
    """Fold the affine chain once at parameter-load time (exact in eval mode)."""
    w1, b1, w2, b2, w3, b3 = params
    w_eff = w1 @ w2 @ w3                     # (dim_input, dim_input*dim_head)
    b_eff = (b1 @ w2 + b2) @ w3 + b3         # (1, dim_input*dim_head)
    return w_eff, b_eff


def vec2mat_encoder(x, w_eff, b_eff, dim_input, dim_head, out_dtype=jnp.float32):
    """x: (B, dim_input) -> (B, dim_input, dim_head)."""
    dim_out = dim_input * dim_head
    assert x.ndim == 2 and x.shape[1] == dim_input, "x must be (B, dim_input)"
    assert w_eff.shape == (dim_input, dim_out), "w_eff shape mismatch"
    assert b_eff.shape == (1, dim_out), "b_eff shape mismatch"
    B = x.shape[0]

    out_itemsize = jnp.dtype(out_dtype).itemsize
    vmem_cap = _vmem_cap_bytes()
    tb, tn = _choose_tiles(B, dim_input, dim_out, out_itemsize, vmem_cap)
    grid = (_cdiv(B, tb), _cdiv(dim_out, tn))

    # Double-buffered tile footprint (x, W tile, bias tile, out tile) + margin.
    tile_bytes = 2 * (
        tb * dim_input * x.dtype.itemsize
        + dim_input * tn * w_eff.dtype.itemsize
        + tn * b_eff.dtype.itemsize
        + tb * tn * out_itemsize
    )
    vmem_limit = int(min(max(2 * tile_bytes, 32 << 20), vmem_cap))

    y = pl.pallas_call(
        _fused_kernel,
        out_shape=jax.ShapeDtypeStruct((B, dim_out), out_dtype),
        grid=grid,
        in_specs=[
            pl.BlockSpec((tb, dim_input), lambda i, j: (i, 0)),   # x batch tile
            pl.BlockSpec((dim_input, tn), lambda i, j: (0, j)),   # W_eff (resident/tiled)
            pl.BlockSpec((1, tn), lambda i, j: (0, j)),           # b_eff
        ],
        out_specs=pl.BlockSpec((tb, tn), lambda i, j: (i, j)),
        compiler_params=pltpu.CompilerParams(
            dimension_semantics=("parallel", "parallel"),  # megacore on v7x
            vmem_limit_bytes=vmem_limit,
        ),
    )(x, w_eff, b_eff)

    # rearrange 'b (h w) -> b h w' (metadata-only reshape; no extra HBM pass).
    return y.reshape(B, dim_input, dim_head)


def init_params(key, dim_input, dim_head=8, n_hidden_encoder=2):
    dim_output_encoder = dim_input * dim_head
    dim_inners = [
        max(dim_input, dim_output_encoder // 2 ** (n_hidden_encoder - i))
        for i in range(n_hidden_encoder)
    ]
    dims_in = [dim_input] + dim_inners
    dims_out = dim_inners + [dim_output_encoder]

    params = []
    for din, dout in zip(dims_in, dims_out):
        kw, kb, key = jax.random.split(key, 3)
        bound = 1.0 / (din ** 0.5)            # PyTorch-Linear-like init scale
        w = jax.random.uniform(kw, (din, dout), jnp.float32, -bound, bound)
        b = jax.random.uniform(kb, (1, dout), jnp.float32, -bound, bound)
        params += [w, b]
    return tuple(params)


def reference_forward(x, params, dim_input, dim_head):
    # Unfused reference: exactly the PyTorch module's eval-mode forward.
    w1, b1, w2, b2, w3, b3 = params
    h = x @ w1 + b1
    h = h @ w2 + b2
    y = jax.nn.sigmoid(h @ w3 + b3)
    return y.reshape(x.shape[0], dim_input, dim_head)


if __name__ == "__main__":
    dim_input = 16
    dim_head = 8

    key = jax.random.PRNGKey(0)
    kx1, kx2, kp = jax.random.split(key, 3)
    params = init_params(kp, dim_input, dim_head)
    w_eff, b_eff = fold_params(params)   # once, at parameter-load time

    # 1) Small aligned batch.
    x1 = jax.random.normal(kx1, (8, dim_input), jnp.float32)
    out1 = jax.block_until_ready(
        vec2mat_encoder(x1, w_eff, b_eff, dim_input, dim_head))
    ref1 = reference_forward(x1, params, dim_input, dim_head)
    assert out1.shape == (8, dim_input, dim_head)
    # Tolerance covers f32 matmul reassociation + the EUP approx reciprocal.
    assert jnp.allclose(out1, ref1, atol=2e-3, rtol=2e-3)

    # 2) Batch not a multiple of the tile: exercises Pallas edge-block write
    #    masking (no wrapper pad/slice copy of the output) and a 2-step grid.
    x2 = jax.random.normal(kx2, (300, dim_input), jnp.float32)
    out2 = jax.block_until_ready(
        vec2mat_encoder(x2, w_eff, b_eff, dim_input, dim_head))
    ref2 = reference_forward(x2, params, dim_input, dim_head)
    assert out2.shape == (300, dim_input, dim_head)
    assert jnp.allclose(out2, ref2, atol=2e-3, rtol=2e-3)

    print("KERNEL_OK")
</pallas_src>

<mosaic_0001>
module attributes {stable_mosaic.version = 11 : i64} {
  func.func @_fused_kernel(%arg0: i32, %arg1: i32, %arg2: memref<8x16xf32, #tpu.memory_space<vmem>>, %arg3: memref<16x128xf32, #tpu.memory_space<vmem>>, %arg4: memref<1x128xf32, #tpu.memory_space<vmem>>, %arg5: memref<8x128xf32, #tpu.memory_space<vmem>>) attributes {dimension_semantics = [#tpu.dimension_semantics<parallel>, #tpu.dimension_semantics<parallel>], iteration_bounds = array<i64: 1, 1>, scalar_prefetch = 0 : i64, scratch_operands = 0 : i64, tpu.core_type = #tpu.core_type<tc>, window_params = [{transform_indices = @transform_0, window_bounds = array<i64: 8, 16>}, {transform_indices = @transform_1, window_bounds = array<i64: 16, 128>}, {transform_indices = @transform_2, window_bounds = array<i64: 1, 128>}, {transform_indices = @transform_3, window_bounds = array<i64: 8, 128>}]} {
    %c0 = arith.constant 0 : index
    %c0_0 = arith.constant 0 : index
    %0 = vector.load %arg2[%c0, %c0_0] : memref<8x16xf32, #tpu.memory_space<vmem>>, vector<8x16xf32>
    %c0_1 = arith.constant 0 : index
    %c0_2 = arith.constant 0 : index
    %1 = vector.load %arg3[%c0_1, %c0_2] : memref<16x128xf32, #tpu.memory_space<vmem>>, vector<16x128xf32>
    %cst = arith.constant dense<0.000000e+00> : vector<8x128xf32>
    %2 = tpu.matmul %0, %1, %cst {dimension_numbers = #tpu.dot_dimension_numbers<[1], [0], [0], [1], [0, 0, 1, 1], [], []>} : vector<8x16xf32>, vector<16x128xf32>, vector<8x128xf32> -> vector<8x128xf32>
    %c0_3 = arith.constant 0 : index
    %c0_4 = arith.constant 0 : index
    %3 = vector.load %arg4[%c0_3, %c0_4] : memref<1x128xf32, #tpu.memory_space<vmem>>, vector<1x128xf32>
    %4 = vector.broadcast %3 : vector<1x128xf32> to vector<8x128xf32>
    %5 = arith.addf %2, %4 : vector<8x128xf32>
    %cst_5 = arith.constant 0.000000e+00 : f32
    %6 = vector.broadcast %cst_5 : f32 to vector<8x128xf32>
    %7 = arith.subf %6, %5 : vector<8x128xf32>
    %8 = math.exp %7 : vector<8x128xf32>
    %cst_6 = arith.constant 1.000000e+00 : f32
    %9 = vector.broadcast %cst_6 : f32 to vector<8x128xf32>
    %10 = arith.addf %9, %8 : vector<8x128xf32>
    %11 = tpu.reciprocal %10 {approx = true} : vector<8x128xf32> -> vector<8x128xf32>
    %c0_7 = arith.constant 0 : index
    %c0_8 = arith.constant 0 : index
    %12 = vector.load %arg5[%c0_7, %c0_8] : memref<8x128xf32, #tpu.memory_space<vmem>>, vector<8x128xf32>
    tpu.vector_store %arg5[%c0_7, %c0_8], %11 {strides = array<i32>} : memref<8x128xf32, #tpu.memory_space<vmem>>, vector<8x128xf32>,
    return
  }
  func.func @transform_0(%arg0: i32, %arg1: i32) -> (i32, i32) {
    %c0_i32 = arith.constant 0 : i32
    %c0_i32_0 = arith.constant 0 : i32
    return %arg0, %c0_i32 : i32, i32
  }
  func.func @transform_1(%arg0: i32, %arg1: i32) -> (i32, i32) {
    %c0_i32 = arith.constant 0 : i32
    %c0_i32_0 = arith.constant 0 : i32
    return %c0_i32, %arg1 : i32, i32
  }
  func.func @transform_2(%arg0: i32, %arg1: i32) -> (i32, i32) {
    %c0_i32 = arith.constant 0 : i32
    %c0_i32_0 = arith.constant 0 : i32
    return %c0_i32, %arg1 : i32, i32
  }
  func.func @transform_3(%arg0: i32, %arg1: i32) -> (i32, i32) {
    %c0_i32 = arith.constant 0 : i32
    return %arg0, %arg1 : i32, i32
  }
}

</mosaic_0001>

<llo_original>
// kernel: tpu_custom_call.1
$region0: #{tpu_custom_call.1}
  #allocation0 [shape = 'u32[]', space=smem, size = 0x4, offset = 0x4, fixed_abs, tag = 'smem constant byte address 0x4 - core index']
  #allocation1 [shape = 'u32[144,128]{1,0:T(1,128)}', space=vmem, size = 0x12000, scoped, tag = 'internal scratch']
  %s0 = inlined_call_operand.hbm [shape: f32[8,16], index: 0, kind: input, shape index: {}]
  %s1 = inlined_call_operand.hbm [shape: f32[16,128], index: 1, kind: input, shape index: {}]
  %s2 = inlined_call_operand.vmem [shape: f32[1,128], index: 2, kind: input, shape index: {}]
  %s3 = inlined_call_operand.hbm [shape: f32[8,128], index: 3, kind: output, shape index: {}]
  %s4 = sld [smem:[#allocation0]]
  $region30: #{tpu_custom_call.1} parent=0
    _
  %s6 = ssub.s32 1, %s4
  %s7 = scalar_select 0, %s6, %s4
  $region1: #{tpu_custom_call.1} parent=0
    #allocation2 [shape = 'u8[4096]{0}', space=vmem, size = 0x1000, scoped, tag = 'input window, operand 0, single buffered']
    #allocation3 [shape = 's32[1]{0}', space=sflag, size = 0x4, scoped, tag = 'scoped memory for tpu_custom_call.1']
    #allocation4 [shape = 's32[1]{0}', space=sflag, size = 0x4, scoped, tag = 'scoped memory for tpu_custom_call.1']
    #allocation5 [shape = 'u8[8192]{0}', space=vmem, size = 0x2000, scoped, tag = 'input window, operand 1, single buffered']
    #allocation6 [shape = 's32[1]{0}', space=sflag, size = 0x4, scoped, tag = 'scoped memory for tpu_custom_call.1']
    #allocation7 [shape = 'u8[4096]{0}', space=vmem, size = 0x1000, scoped, tag = 'output window, operand 0, single buffered']
    %8 = vsyncpa [#allocation3], 0
    %9 = vsyncpa [#allocation6], 0
    %10 = vsyncpa [#allocation4], 0
    // Predicated region
    $region2: #{tpu_custom_call.1} parent=1 // pred_check
      _
    $region3: #{tpu_custom_call.1} parent=1 // pred_check_branch
      %12 = sbr.rel (0) target = $region5
    $region4: #{tpu_custom_call.1} parent=1 // pred_region
      %s14 = ssub.s32 128, 128
      %15 = vsyncadd [#allocation3], %s14
      %s17 = sshll.u32 [#allocation2], 4
      %s18 = int_to_ptr.vmem [resolvable:$true] %s17
      %20 = dma.hbm_to_vmem [thread:$0]  %s0, 128, %s18, [#allocation3]
    $region5: #{tpu_custom_call.1} parent=1 // pred_fallthru
      _
    // Predicated region
    $region6: #{tpu_custom_call.1} parent=1 // pred_check
      _
    $region7: #{tpu_custom_call.1} parent=1 // pred_check_branch
      %22 = sbr.rel (0) target = $region9
    $region8: #{tpu_custom_call.1} parent=1 // pred_region
      %s24 = ssub.s32 256, 256
      %25 = vsyncadd [#allocation6], %s24
      %s26 = sshll.u32 [#allocation5], 4
      %s27 = int_to_ptr.vmem [resolvable:$true] %s26
      %32 = dma.hbm_to_vmem [thread:$0]  %s1, 256, %s27, [#allocation6], 128, 128, 8
    $region9: #{tpu_custom_call.1} parent=1 // pred_fallthru
      _
    // Predicated region
    $region10: #{tpu_custom_call.1} parent=1 // pred_check
      _
    $region11: #{tpu_custom_call.1} parent=1 // pred_check_branch
      %34 = sbr.rel (0) target = $region13
    $region12: #{tpu_custom_call.1} parent=1 // pred_region
      _
    $region13: #{tpu_custom_call.1} parent=1 // pred_fallthru
      _
    // Predicated region
    $region14: #{tpu_custom_call.1} parent=1 // pred_check
      _
    $region15: #{tpu_custom_call.1} parent=1 // pred_check_branch
      %36 = sbr.rel (0) target = $region17
    $region16: #{tpu_custom_call.1} parent=1 // pred_region
      %37 = dma.done [#allocation3], 128
    $region17: #{tpu_custom_call.1} parent=1 // pred_fallthru
      _
    // Predicated region
    $region18: #{tpu_custom_call.1} parent=1 // pred_check
      _
    $region19: #{tpu_custom_call.1} parent=1 // pred_check_branch
      %39 = sbr.rel (0) target = $region21
    $region20: #{tpu_custom_call.1} parent=1 // pred_region
      %40 = dma.done [#allocation6], 256
    $region21: #{tpu_custom_call.1} parent=1 // pred_fallthru
      _
    %v41 = vld [vmem:[#allocation2] sm:$0xff]
    %v42 = vld [vmem:[#allocation5] sm:$0xff]
    %v43 = vld [vmem:[#allocation5 + $0x8] sm:$0xff]
    %v44 = vld [vmem:[%s2] sm:$0x1]
    %v46 = vlaneseq
    %v47 = vshrl.u32 %v46, 7
    %v48 = vsub.s32 0, %v47
    %v49 = vrot.slane %v44, %v48
    %vm51 = vcmask 130048
    %v53 = vsel %vm51, %v41, 0
    %55 = vmatprep.subr.mxu0 0.0
    %56 = vmatpush1.msra.mxu0 %v42
    %57 = vmatprep.subr.mxu0 0.0
    %58 = vmatpush1.msra.mxu0 %v43
    %59 = vmatprep.subr.mxu0 0.0
    %60 = vmatpush1.msra.mxu0 0.0
    %61 = vmatprep.subr.mxu0 0.0
    %62 = vmatpush1.msra.mxu0 0.0
    %63 = vmatprep.subr.mxu0 0.0
    %64 = vmatpush1.msra.mxu0 0.0
    %65 = vmatprep.subr.mxu0 0.0
    %66 = vmatpush1.msra.mxu0 0.0
    %67 = vmatprep.subr.mxu0 0.0
    %68 = vmatpush1.msra.mxu0 0.0
    %69 = vmatprep.subr.mxu0 0.0
    %70 = vmatpush1.msra.mxu0 0.0
    %71 = vmatprep.subr.mxu0 0.0
    %72 = vmatpush1.msra.mxu0 0.0
    %73 = vmatprep.subr.mxu0 0.0
    %74 = vmatpush1.msra.mxu0 0.0
    %75 = vmatprep.subr.mxu0 0.0
    %76 = vmatpush1.msra.mxu0 0.0
    %77 = vmatprep.subr.mxu0 0.0
    %78 = vmatpush1.msra.mxu0 0.0
    %79 = vmatprep.subr.mxu0 0.0
    %80 = vmatpush1.msra.mxu0 0.0
    %81 = vmatprep.subr.mxu0 0.0
    %82 = vmatpush1.msra.mxu0 0.0
    %83 = vmatprep.subr.mxu0 0.0
    %84 = vmatpush1.msra.mxu0 0.0
    %85 = vmatprep.subr.mxu0 0.0
    %86 = vmatpush1.msra.mxu0 0.0
    %87 = vmatprep.subr.mxu0 0.0
    %88 = vmatpush1.msra.mxu0 0.0
    %89 = vmatprep.subr.mxu0 0.0
    %90 = vmatpush1.msra.mxu0 0.0
    %91 = vmatprep.subr.mxu0 0.0
    %92 = vmatpush1.msra.mxu0 0.0
    %93 = vmatprep.subr.mxu0 0.0
    %94 = vmatpush1.msra.mxu0 0.0
    %95 = vmatprep.subr.mxu0 0.0
    %96 = vmatpush1.msra.mxu0 0.0
    %97 = vmatprep.subr.mxu0 0.0
    %98 = vmatpush1.msra.mxu0 0.0
    %99 = vmatprep.subr.mxu0 0.0
    %100 = vmatpush1.msra.mxu0 0.0
    %101 = vmatprep.subr.mxu0 0.0
    %102 = vmatpush1.msra.mxu0 0.0
    %103 = vmatprep.subr.mxu0 0.0
    %104 = vmatpush1.msra.mxu0 0.0
    %105 = vmatprep.subr.mxu0 0.0
    %106 = vmatpush1.msra.mxu0 0.0
    %107 = vmatprep.subr.mxu0 0.0
    %108 = vmatpush1.msra.mxu0 0.0
    %109 = vmatprep.subr.mxu0 0.0
    %110 = vmatpush1.msra.mxu0 0.0
    %111 = vmatprep.subr.mxu0 0.0
    %112 = vmatpush1.msra.mxu0 0.0
    %113 = vmatprep.subr.mxu0 0.0
    %114 = vmatpush1.msra.mxu0 0.0
    %115 = vmatprep.subr.mxu0 0.0
    %116 = vmatpush1.msra.mxu0 0.0
    %117 = vmatprep.subr.mxu0 0.0
    %118 = vmatpush1.msra.mxu0 0.0
    %119 = vmatprep.mubr.f32.mxu0 0.0
    %120 = vmatmul.mubr.f32.gmra.mrb[0].mxu0 %v53
    %v121 = vpop.f32.mrb[0].mxu0
    %v122 = vadd.f32 %v49, %v121
    %v123 = vpop.f32.mrb[0].mxu0
    %124 = vdwg.mxu0
    %v125 = vsub.f32 0.0, %v122
    %v126 = vmul.f32 %v125, 1.442695
    %v127 = vpow.pop %v126
    %v128 = vadd.f32 %v127, 1.0
    %v129 = vrcp.pop %v128
    %130 = vst [vmem:[#allocation7] sm:$0xff] %v129
    // Predicated region
    $region22: #{tpu_custom_call.1} parent=1 // pred_check
      _
    $region23: #{tpu_custom_call.1} parent=1 // pred_check_branch
      %132 = sbr.rel (0) target = $region25
    $region24: #{tpu_custom_call.1} parent=1 // pred_region
      %s134 = ssub.s32 128, 128
      %135 = vsyncadd [#allocation4], %s134
      %s137 = sshll.u32 [#allocation7], 4
      %s138 = int_to_ptr.vmem [resolvable:$true] %s137
      %140 = dma.vmem_to_hbm [thread:$0]  %s138, 128, %s3, [#allocation4]
    $region25: #{tpu_custom_call.1} parent=1 // pred_fallthru
      _
    // Predicated region
    $region26: #{tpu_custom_call.1} parent=1 // pred_check
      _
    $region27: #{tpu_custom_call.1} parent=1 // pred_check_branch
      %142 = sbr.rel (0) target = $region29
    $region28: #{tpu_custom_call.1} parent=1 // pred_region
      %143 = dma.done [#allocation4], 128
    $region29: #{tpu_custom_call.1} parent=1 // pred_fallthru
      _
    %144 = vsyncpa [#allocation3], 1
    %145 = vsyncpa [#allocation6], 1
    %146 = vsyncpa [#allocation4], 1

</llo_original>
